<compile_context>
chip_gen: v5e
topology: v5e:2x2
jax: 0.10.0
libtpu: 0.0.40
codegen_flags: <defaults>
</compile_context>

<pallas_src>
import jax
import jax.numpy as jnp
from jax.experimental import pallas as pl
from jax.experimental.pallas import tpu as pltpu


def _zero_rows_kernel(idx_ref, nd_ref, x0_ref, o_ref):
    # idx_ref : (G,)  int32 SMEM — dropped flat-row indices, padded with 0.
    # nd_ref  : (1,)  int32 SMEM — number of genuinely dropped rows.
    # x0_ref  : (1, L, C) VMEM  — flat row 0 (always kept), resident across steps.
    # o_ref   : (1, L, C) VMEM  — output block for flat row idx_ref[i].
    #
    # Real steps (i < num_dropped): write zeros to the dropped row.
    # Padding steps (i >= num_dropped): rewrite row 0 with its own contents
    # (idempotent), so the always-kept query row is never corrupted.
    i = pl.program_id(0)
    is_padding = (i >= nd_ref[0]).astype(o_ref.dtype)
    o_ref[...] = x0_ref[...] * is_padding


def _x_index_map(i, idx_ref, nd_ref):
    # Input block pinned to flat row 0: fetched once, stays resident.
    return (0, 0, 0)


def _out_index_map(i, idx_ref, nd_ref):
    # Data-dependent output row: a dropped row for real steps, row 0 for padding.
    return (idx_ref[i], 0, 0)


def row_dropout(x, key, *, p: float = 0.15, min_keep: int = 32,
                training: bool = True):
    """Pallas implementation of RowDropout.forward.

    x   : (B, N_seq, L, C) MSA activations.
    key : jax.random PRNG key controlling the row-drop draws.

    For best performance, call under jax.jit with `x` donated so the
    input/output alias is zero-copy (only dropped rows are written).
    """
    if not training:
        return x

    B, N_seq, L, C = x.shape
    p_eff = p * min(1.0, N_seq / min_keep)
    if p_eff <= 0.0 or N_seq <= 1:
        return x

    # Per-row keep mask in plain JAX (query row of every batch always kept).
    keep = jax.random.uniform(key, (B, N_seq), dtype=jnp.float32) > p_eff
    keep = keep.at[:, 0].set(True)

    R = B * N_seq
    dropped = jnp.logical_not(keep).reshape(R)
    num_dropped = jnp.sum(dropped).astype(jnp.int32).reshape(1)

    # Static upper bound on droppable rows (row n=0 of each batch is never dropped).
    G = B * (N_seq - 1)
    (drop_idx,) = jnp.nonzero(dropped, size=G, fill_value=0)
    drop_idx = drop_idx.astype(jnp.int32)

    x3 = x.reshape(R, L, C)

    out = pl.pallas_call(
        _zero_rows_kernel,
        out_shape=jax.ShapeDtypeStruct((R, L, C), x.dtype),
        grid_spec=pltpu.PrefetchScalarGridSpec(
            num_scalar_prefetch=2,
            grid=(G,),
            in_specs=[pl.BlockSpec((1, L, C), _x_index_map)],
            out_specs=pl.BlockSpec((1, L, C), _out_index_map),
        ),
        # Flat inputs: drop_idx(0), num_dropped(1), x3(2) -> alias x3 with out 0.
        # Kept rows are therefore never read or written by the kernel.
        input_output_aliases={2: 0},
        compiler_params=pltpu.CompilerParams(
            dimension_semantics=("arbitrary",),
        ),
    )(drop_idx, num_dropped, x3)
    return out.reshape(B, N_seq, L, C)


if __name__ == "__main__":
    root = jax.random.PRNGKey(0)
    xkey, k1, k2 = jax.random.split(root, 3)
    B, N_seq, L, C = 2, 8, 16, 32
    x = jax.random.normal(xkey, (B, N_seq, L, C), dtype=jnp.float32)

    def reference(x, key, p, min_keep):
        # Pure-JAX replica of the module's forward (same draws as the wrapper).
        p_eff = p * min(1.0, x.shape[1] / min_keep)
        keep = jax.random.uniform(key, x.shape[:2], dtype=jnp.float32) > p_eff
        keep = keep.at[:, 0].set(True)
        return x * keep[:, :, None, None].astype(x.dtype)

    # Default hyperparameters (low effective rate at N_seq=8).
    y1 = jax.block_until_ready(row_dropout(x, k1, p=0.15, min_keep=32, training=True))
    assert y1.shape == x.shape and y1.dtype == x.dtype
    assert bool(jnp.array_equal(y1, reference(x, k1, 0.15, 32)))

    # Aggressive rate so the zero-write path is definitely exercised.
    y2 = jax.block_until_ready(row_dropout(x, k2, p=0.5, min_keep=4, training=True))
    assert bool(jnp.array_equal(y2, reference(x, k2, 0.5, 4)))
    # Query row (index 0) is always kept verbatim.
    assert bool(jnp.all(y2[:, 0] == x[:, 0]))
    # Every other row is either kept verbatim or zeroed entirely.
    row_eq = jnp.all(jnp.reshape(y2 == x, (B, N_seq, -1)), axis=-1)
    row_zero = jnp.all(jnp.reshape(y2 == 0.0, (B, N_seq, -1)), axis=-1)
    assert bool(jnp.all(jnp.logical_or(row_eq, row_zero)))

    # Eval mode passes through unchanged.
    y_eval = row_dropout(x, k1, training=False)
    assert y_eval is x or bool(jnp.all(y_eval == x))

    print("KERNEL_OK")
</pallas_src>

<mosaic_0001>
module attributes {stable_mosaic.version = 11 : i64} {
  func.func @_zero_rows_kernel(%arg0: i32, %arg1: memref<14xi32, #tpu.memory_space<smem>>, %arg2: memref<1xi32, #tpu.memory_space<smem>>, %arg3: memref<1x16x32xf32, #tpu.memory_space<vmem>>, %arg4: memref<1x16x32xf32, #tpu.memory_space<vmem>>) attributes {dimension_semantics = [#tpu.dimension_semantics<arbitrary>], iteration_bounds = array<i64: 14>, scalar_prefetch = 2 : i64, scratch_operands = 0 : i64, tpu.core_type = #tpu.core_type<tc>, window_params = [{transform_indices = @transform_0, window_bounds = array<i64: 1, 16, 32>}, {transform_indices = @transform_1, window_bounds = array<i64: 1, 16, 32>}]} {
    %c0 = arith.constant 0 : index
    %0 = memref.load %arg2[%c0] : memref<1xi32, #tpu.memory_space<smem>>
    %1 = arith.cmpi sge, %arg0, %0 : i32
    %2 = arith.extui %1 : i1 to i32
    %3 = arith.sitofp %2 : i32 to f32
    %c0_0 = arith.constant 0 : index
    %c0_1 = arith.constant 0 : index
    %c0_2 = arith.constant 0 : index
    %4 = vector.load %arg3[%c0_0, %c0_1, %c0_2] : memref<1x16x32xf32, #tpu.memory_space<vmem>>, vector<1x16x32xf32>
    %5 = vector.broadcast %3 : f32 to vector<1x16x32xf32>
    %6 = arith.mulf %4, %5 : vector<1x16x32xf32>
    %c0_3 = arith.constant 0 : index
    %c0_4 = arith.constant 0 : index
    %c0_5 = arith.constant 0 : index
    %7 = vector.load %arg4[%c0_3, %c0_4, %c0_5] : memref<1x16x32xf32, #tpu.memory_space<vmem>>, vector<1x16x32xf32>
    tpu.vector_store %arg4[%c0_3, %c0_4, %c0_5], %6 {strides = array<i32>} : memref<1x16x32xf32, #tpu.memory_space<vmem>>, vector<1x16x32xf32>,
    return
  }
  func.func @transform_0(%arg0: i32, %arg1: memref<14xi32, #tpu.memory_space<smem>>, %arg2: memref<1xi32, #tpu.memory_space<smem>>) -> (i32, i32, i32) {
    %c0_i32 = arith.constant 0 : i32
    %c0_i32_0 = arith.constant 0 : i32
    %c0_i32_1 = arith.constant 0 : i32
    %c0_i32_2 = arith.constant 0 : i32
    return %c0_i32, %c0_i32_0, %c0_i32_1 : i32, i32, i32
  }
  func.func @transform_1(%arg0: i32, %arg1: memref<14xi32, #tpu.memory_space<smem>>, %arg2: memref<1xi32, #tpu.memory_space<smem>>) -> (i32, i32, i32) {
    %0 = arith.index_cast %arg0 : i32 to index
    %1 = memref.load %arg1[%0] : memref<14xi32, #tpu.memory_space<smem>>
    %c0_i32 = arith.constant 0 : i32
    %c0_i32_0 = arith.constant 0 : i32
    %c0_i32_1 = arith.constant 0 : i32
    return %1, %c0_i32, %c0_i32_0 : i32, i32, i32
  }
}

</mosaic_0001>

<llo_original>
// kernel: tpu_custom_call.1
$region0: #{tpu_custom_call.1}
  #allocation0 [shape = 'u32[]', space=smem, size = 0x4, offset = 0x4, fixed_abs, tag = 'smem constant byte address 0x4 - core index']
  #allocation1 [shape = 'u32[72,128]{1,0:T(1,128)}', space=vmem, size = 0x9000, scoped, tag = 'internal scratch']
  #allocation2 [shape = 's32[1]{0}', space=sflag, size = 0x4, scoped, tag = 'scoped memory for tpu_custom_call.1']
  #allocation3 [shape = 'u8[512]{0}', space=smem, size = 0x200, scoped, tag = 'prefetched SMEM operand 0']
  #allocation4 [shape = 's32[1]{0:T(128)S(6)}', space=smem, size = 0x200, scoped, tag = 'prefetched SMEM operand 1']
  %s0 = inlined_call_operand.vmem [shape: s32[14], index: 0, kind: input, shape index: {}]
  %s1 = inlined_call_operand.<no memory space> [shape: s32[1], index: 1, kind: input, shape index: {}]
  %s2 = inlined_call_operand.hbm [shape: f32[16,16,32], index: 2, kind: input, shape index: {}, may-alias: {2,3}]
  %s3 = inlined_call_operand.hbm [shape: f32[16,16,32], index: 3, kind: output, shape index: {}, may-alias: {2,3}]
  %s4 = sld [smem:[#allocation0]]
  $region41: #{tpu_custom_call.1} parent=0
    _
  %s6 = ssub.s32 1, %s4
  %s7 = scalar_select 0, %s6, %s4
  %s9 = sshll.u32 %s0, 4
  %s10 = int_to_ptr.vmem [resolvable:$true] %s9
  %12 = dma.vmem_to_smem %s10, 16, [#allocation3], [#allocation2]
  %13 = sst [smem:[#allocation4]] %s1
  %15 = dma.done [#allocation2], 16
  %16 = sfence
  $region1: #{tpu_custom_call.1} parent=0
    #allocation5 [shape = 'u8[8192]{0}', space=vmem, size = 0x2000, scoped, tag = 'input window, operand 2, single buffered']
    #allocation6 [shape = 's32[2]{0}', space=sflag, size = 0x8, scoped, tag = 'scoped memory for tpu_custom_call.1']
    #allocation7 [shape = 's32[2]{0}', space=sflag, size = 0x8, scoped, tag = 'scoped memory for tpu_custom_call.1']
    #allocation8 [shape = 'u8[16384]{0}', space=vmem, size = 0x4000, scoped, tag = 'output window, operand 0']
    %17 = vsyncpa [#allocation6], 0
    %18 = vsyncpa [#allocation7], 0
    %s19 = scalar_lea.sflag [#allocation7], 1
    %20 = vsyncpa %s19, 0
    loop: start=0, step=1, limit=16
    $region2: #{tpu_custom_call.1} parent=1 // loop_pre_header
      _
    $region3: #{tpu_custom_call.1} parent=1 // loop_header
      %s22 = sphi 0, %s26
      %p23 = scmp.ge.s32.totalorder %s22, 16
      %s30 = sphi 0, %s30
      %s32 = sphi 0, %s30
      %s33 = sphi 0, %s32
      %s47 = sphi 0, %s33
      %s55 = sphi 0, %s57
      %s58 = sphi 0, %s55
      %s59 = sphi 0, %s58
      %s75 = sphi 0, %s59
    $region4: #{tpu_custom_call.1} parent=1 // loop_header_branch
      %25 = sbr.rel (%p23) target = $region8
    $region5: #{tpu_custom_call.1} parent=1 // loop_body
      %s27 = ssub.s32 %s22, 1
      %s28 = ssub.s32 %s22, 2
      %s29 = sadd.s32 %s22, 1
      %s31 = sadd.s32 %s30, 1
      %p34 = scmp.eq.s32.totalorder %s22, 13
      %p35 = scmp.ne.s32.totalorder %s30, %s32
      %p36 = scmp.eq.s32.totalorder %s22, 0
      %p37 = por %p35, %p36
      %p38 = scmp.ne.s32.totalorder %s30, %s32
      %p39 = scmp.eq.s32.totalorder %s27, 13
      %p40 = por %p38, %p39
      %p41 = scmp.ne.s32.totalorder %s32, %s33
      %p42 = scmp.eq.s32.totalorder %s27, 0
      %p43 = por %p41, %p42
      %p44 = scmp.ne.s32.totalorder %s32, %s33
      %p45 = scmp.eq.s32.totalorder %s28, 13
      %p46 = por %p44, %p45
      %p48 = scmp.ne.s32.totalorder %s33, %s47
      %p49 = scmp.eq.s32.totalorder %s28, 0
      %p50 = por %p48, %p49
      %s51 = sld [smem:[#allocation3 + %s22]]
      %s52 = sld [smem:[#allocation3 + %s29]]
      %s53 = ssub.s32 %s51, %s52
      %p54 = scmp.eq.s32.totalorder %s53, 0
      %s56 = sadd.s32 %s55, 1
      %s57 = scalar_select %p54, %s55, %s56
      %p60 = pneg %p54
      %p61 = scmp.eq.s32.totalorder %s22, 13
      %p62 = por %p60, %p61
      %p63 = scmp.ne.s32.totalorder %s55, %s58
      %p64 = scmp.eq.s32.totalorder %s22, 0
      %p65 = por %p63, %p64
      %p66 = scmp.ne.s32.totalorder %s55, %s58
      %p67 = scmp.eq.s32.totalorder %s27, 13
      %p68 = por %p66, %p67
      %p69 = scmp.ne.s32.totalorder %s58, %s59
      %p70 = scmp.eq.s32.totalorder %s27, 0
      %p71 = por %p69, %p70
      %p72 = scmp.ne.s32.totalorder %s58, %s59
      %p73 = scmp.eq.s32.totalorder %s28, 13
      %p74 = por %p72, %p73
      %p76 = scmp.ne.s32.totalorder %s59, %s75
      %p77 = scmp.eq.s32.totalorder %s28, 0
      %p78 = por %p76, %p77
      %p79 = scmp.le.s32.totalorder 1, %s22
      %p80 = scmp.lt.s32.totalorder %s22, 15
      %p81 = pnand %p79, %p80
      %p82 = pneg %p81
      // Predicated region
      $region9: #{tpu_custom_call.1} parent=5 // pred_check
        _
      $region10: #{tpu_custom_call.1} parent=5 // pred_check_branch
        %84 = sbr.rel (%p81) target = $region12
      $region11: #{tpu_custom_call.1} parent=5 // pred_region
        %s85 = ssub.s32 %s22, 1
        // Predicated region
        $region13: #{tpu_custom_call.1} parent=11 // pred_check
          %p86 = pneg %p43
        $region14: #{tpu_custom_call.1} parent=11 // pred_check_branch
          %88 = sbr.rel (%p86) target = $region16
        $region15: #{tpu_custom_call.1} parent=11 // pred_region
          %90 = vsyncadd [#allocation6], 0
          %s91 = sshll.u32 %s2, 4
          %s92 = int_to_ptr.hbm [resolvable:$true] %s91
          %s93 = sshll.u32 [#allocation5], 4
          %s94 = int_to_ptr.vmem [resolvable:$true] %s93
          %99 = dma.hbm_to_vmem [thread:$0]  %s92, 256, %s94, [#allocation6], 128, 128, 8
        $region16: #{tpu_custom_call.1} parent=11 // pred_fallthru
          _
      $region12: #{tpu_custom_call.1} parent=5 // pred_fallthru
        _
      %p100 = scmp.lt.s32.totalorder %s22, 14
      // Predicated region
      $region17: #{tpu_custom_call.1} parent=5 // pred_check
        %p101 = pneg %p100
      $region18: #{tpu_custom_call.1} parent=5 // pred_check_branch
        %103 = sbr.rel (%p101) target = $region20
      $region19: #{tpu_custom_call.1} parent=5 // pred_region
        _
      $region20: #{tpu_custom_call.1} parent=5 // pred_fallthru
        _
      %p104 = scmp.le.s32.totalorder 1, %s22
      %p105 = scmp.lt.s32.totalorder %s22, 15
      %p106 = pnand %p104, %p105
      %p107 = pneg %p106
      // Predicated region
      $region21: #{tpu_custom_call.1} parent=5 // pred_check
        _
      $region22: #{tpu_custom_call.1} parent=5 // pred_check_branch
        %109 = sbr.rel (%p106) target = $region24
      $region23: #{tpu_custom_call.1} parent=5 // pred_region
        %s110 = ssub.s32 %s22, 1
        // Predicated region
        $region25: #{tpu_custom_call.1} parent=23 // pred_check
          %p111 = pneg %p43
        $region26: #{tpu_custom_call.1} parent=23 // pred_check_branch
          %113 = sbr.rel (%p111) target = $region28
        $region27: #{tpu_custom_call.1} parent=23 // pred_region
          %115 = dma.done [#allocation6], 256
        $region28: #{tpu_custom_call.1} parent=23 // pred_fallthru
          _
        %p116 = pneg %p43
        %p117 = pneg %p40
        %p118 = pneg %p71
        %p119 = pneg %p68
        %s120 = sand.u32 %s58, 1
        %s121 = scalar_lea.sflag [#allocation7], %s120
        %s122 = sand.u32 %s58, 1
        %s123 = smul.addr %s122, 16
        %s124 = scalar_lea.vmem [#allocation8], %s123
        %s125 = sld [smem:[#allocation3 + %s27]]
        %s126 = sld [smem:[#allocation4]]
        %p127 = scmp.ge.s32.totalorder %s27, %s126
        %s128 = scalar_select %p127, 1, 0
        %s129 = scvt.s32.f32 %s128
        %v130 = vld [vmem:[#allocation5] sm:$0xff]
        %v131 = vld [vmem:[#allocation5 + $0x8] sm:$0xff]
        %v132 = vstv %s129
        %v133 = vmul.f32 %v130, %v132
        %v134 = vmul.f32 %v131, %v132
        %vm135 = vcmask 261120
        %136 = vst.msk [vmem:[%s124] sm:$0xff] %vm135, %v133
        %137 = vst.msk [vmem:[%s124 + $0x8] sm:$0xff] %vm135, %v134
        %s138 = sand.u32 %s58, 1
        %s139 = scalar_lea.sflag [#allocation7], %s138
        %s140 = sand.u32 %s58, 1
        %s141 = smul.addr %s140, 16
        %s142 = scalar_lea.vmem [#allocation8], %s141
        // Predicated region
        $region29: #{tpu_custom_call.1} parent=23 // pred_check
          %p143 = pneg %p68
        $region30: #{tpu_custom_call.1} parent=23 // pred_check_branch
          %145 = sbr.rel (%p143) target = $region32
        $region31: #{tpu_custom_call.1} parent=23 // pred_region
          %s146 = sld [smem:[#allocation3 + %s27]]
          %148 = vsyncadd %s139, 0
          %s149 = smul.addr %s146, 2
          %s150 = smul.addr %s149, 8
          %s151 = scalar_lea.hbm %s3, %s150
          %s152 = sshll.u32 %s142, 4
          %s153 = int_to_ptr.vmem [resolvable:$true] %s152
          %s154 = sshll.u32 %s151, 4
          %s155 = int_to_ptr.hbm [resolvable:$true] %s154
          %160 = dma.vmem_to_hbm [thread:$0]  %s153, 256, %s155, %s139, 128, 128, 8
        $region32: #{tpu_custom_call.1} parent=23 // pred_fallthru
          _
      $region24: #{tpu_custom_call.1} parent=5 // pred_fallthru
        _
      %p161 = scmp.le.s32.totalorder 2, %s22
      // Predicated region
      $region33: #{tpu_custom_call.1} parent=5 // pred_check
        %p162 = pneg %p161
      $region34: #{tpu_custom_call.1} parent=5 // pred_check_branch
        %164 = sbr.rel (%p162) target = $region36
      $region35: #{tpu_custom_call.1} parent=5 // pred_region
        %s165 = ssub.s32 %s22, 2
        // Predicated region
        $region37: #{tpu_custom_call.1} parent=35 // pred_check
          %p166 = pneg %p74
        $region38: #{tpu_custom_call.1} parent=35 // pred_check_branch
          %168 = sbr.rel (%p166) target = $region40
        $region39: #{tpu_custom_call.1} parent=35 // pred_region
          %s169 = sand.u32 %s59, 1
          %s170 = scalar_lea.sflag [#allocation7], %s169
          %s171 = sand.u32 %s59, 1
          %s172 = smul.addr %s171, 16
          %s173 = scalar_lea.vmem [#allocation8], %s172
          %175 = dma.done %s170, 256
        $region40: #{tpu_custom_call.1} parent=35 // pred_fallthru
          _
      $region36: #{tpu_custom_call.1} parent=5 // pred_fallthru
        _
    $region6: #{tpu_custom_call.1} parent=1 // loop_footer
      %s26 = sadd.s32 1, %s22
    $region7: #{tpu_custom_call.1} parent=1 // loop_footer_branch
      %21 = sbr.rel target = $region3
    $region8: #{tpu_custom_call.1} parent=1 // loop_exit
      _
    %176 = vsyncpa [#allocation6], 1
    %s177 = scalar_lea.sflag [#allocation6], 1
    %178 = vsyncpa %s177, 1
    %179 = vsyncpa [#allocation7], 1
    %s180 = scalar_lea.sflag [#allocation7], 1
    %181 = vsyncpa %s180, 1

</llo_original>
